<compile_context>
chip_gen: v7x
topology: tpu7x:2x2x1
jax: 0.10.0
libtpu: 0.0.40
codegen_flags: <defaults>
</compile_context>

<pallas_src>
import jax
import jax.numpy as jnp
from jax.experimental import pallas as pl
from jax.experimental.pallas import tpu as pltpu

BN_EPS = 1e-5
LANE = 128


def _round_up(x, m):
    return (x + m - 1) // m * m


def _critic_kernel(state_ref, action_ref,
                   w1_ref, gamma_ref, beta_ref,
                   w2s_ref, w2a_ref, b2_ref,
                   w3_ref, b3_ref,
                   out_ref):
    # ---- fcs1: state @ W1  (bias dropped: cancelled by BN mean-subtract) ---
    state = state_ref[...].astype(jnp.bfloat16)                 # (B, S)
    h1 = jnp.dot(state, w1_ref[...],
                 preferred_element_type=jnp.float32)            # (B, F1p) f32

    # ---- BatchNorm1d, training mode (biased batch variance), fp32 ----------
    n = h1.shape[0]
    mean = jnp.sum(h1, axis=0, keepdims=True) * (1.0 / n)       # (1, F1p)
    centered = h1 - mean
    var = jnp.sum(centered * centered, axis=0, keepdims=True) * (1.0 / n)
    scale = jax.lax.rsqrt(var + BN_EPS) * gamma_ref[...]        # fold gamma (1,F1p)
    xs = jnp.maximum(centered * scale + beta_ref[...], 0.0)     # (B, F1p) f32

    # ---- fc2 on cat([xs, action]) == xs @ W2s + action @ W2a ---------------
    action = action_ref[...].astype(jnp.bfloat16)               # (B, A)
    h2 = jnp.dot(xs.astype(jnp.bfloat16), w2s_ref[...],
                 preferred_element_type=jnp.float32)
    h2 = h2 + jnp.dot(action, w2a_ref[...],
                      preferred_element_type=jnp.float32)
    h2 = jnp.maximum(h2 + b2_ref[...], 0.0)                     # (B, F2p) f32

    # ---- fc3: single output column -> VPU multiply + lane reduce (no MXU) --
    q = jnp.sum(h2 * w3_ref[...], axis=-1, keepdims=True)       # (B, 1)
    out_ref[...] = q + b3_ref[...]


def critic_forward(state, action, kparams):
    """state: (B, state_size) f32, action: (B, action_size) f32."""
    B = state.shape[0]
    vmem = pl.BlockSpec(memory_space=pltpu.MemorySpace.VMEM)
    args = (state, action,
            kparams["w1"], kparams["gamma"], kparams["beta"],
            kparams["w2s"], kparams["w2a"], kparams["b2"],
            kparams["w3"], kparams["b3"])
    return pl.pallas_call(
        _critic_kernel,
        out_shape=jax.ShapeDtypeStruct((B, 1), jnp.float32),
        in_specs=[vmem] * len(args),
        out_specs=vmem,
    )(*args)


def init_params(key, state_size, action_size, fcs1_units=400, fc2_units=300):
    """Logical (unpadded, fp32) params mirroring Critic.reset_parameters()."""
    ks = jax.random.split(key, 8)
    # hidden_init uses weight.size()[0] == out_features in PyTorch.
    lim1 = 1.0 / jnp.sqrt(jnp.float32(fcs1_units))
    lim2 = 1.0 / jnp.sqrt(jnp.float32(fc2_units))
    u = lambda k, shape, lim: jax.random.uniform(
        k, shape, jnp.float32, minval=-lim, maxval=lim)

    w1 = u(ks[0], (state_size, fcs1_units), lim1)                   # (in, out)
    b1 = u(ks[1], (1, fcs1_units), 1.0 / jnp.sqrt(jnp.float32(state_size)))
    gamma = jnp.ones((1, fcs1_units), jnp.float32)                  # BN weight
    beta = jnp.zeros((1, fcs1_units), jnp.float32)                  # BN bias

    w2_full = u(ks[2], (fcs1_units + action_size, fc2_units), lim2)
    w2s = w2_full[:fcs1_units]                                      # multiplies xs
    w2a = w2_full[fcs1_units:]                                      # multiplies action
    b2 = u(ks[3], (1, fc2_units),
           1.0 / jnp.sqrt(jnp.float32(fcs1_units + action_size)))

    w3 = u(ks[4], (fc2_units, 1), 3e-3)
    b3 = u(ks[5], (1, 1), 1.0 / jnp.sqrt(jnp.float32(fc2_units)))

    return dict(w1=w1, b1=b1, gamma=gamma, beta=beta,
                w2s=w2s, w2a=w2a, b2=b2, w3=w3, b3=b3)


def pad_params_for_kernel(p, state_size, action_size, fcs1_units, fc2_units):
    """128-align feature dims, cast matmul weights to bf16, fc3 weight as a row.

    Zero padding keeps padded BN lanes exactly 0 through ReLU (gamma=beta=0
    on padded columns), padded fc2 columns 0 (b2 padded with 0), and padded
    fc3 lanes contribute 0 (w3 padded with 0).  b1 is intentionally dropped
    (mathematically dead under training-mode BN).
    """
    f1p = _round_up(fcs1_units, LANE)
    f2p = _round_up(fc2_units, LANE)

    def pad2(x, rows, cols):
        return jnp.pad(x, ((0, rows - x.shape[0]), (0, cols - x.shape[1])))

    return dict(
        w1=pad2(p["w1"], state_size, f1p).astype(jnp.bfloat16),      # (S, F1p)
        gamma=pad2(p["gamma"], 1, f1p),                              # (1, F1p) f32
        beta=pad2(p["beta"], 1, f1p),                                # (1, F1p) f32
        w2s=pad2(p["w2s"], f1p, f2p).astype(jnp.bfloat16),           # (F1p, F2p)
        w2a=pad2(p["w2a"], action_size, f2p).astype(jnp.bfloat16),   # (A, F2p)
        b2=pad2(p["b2"], 1, f2p),                                    # (1, F2p) f32
        w3=pad2(p["w3"].T, 1, f2p),                                  # (1, F2p) f32 row
        b3=p["b3"],                                                  # (1, 1) f32
    )


def critic_reference(state, action, p):
    """Faithful forward (incl. fcs1 bias + explicit concat), with matmul
    operands in bf16 to mirror the kernel's MXU precision (fp32 accumulate)."""
    bf = lambda x: x.astype(jnp.bfloat16)
    h1 = jnp.dot(bf(state), bf(p["w1"]),
                 preferred_element_type=jnp.float32) + p["b1"]
    mean = jnp.mean(h1, axis=0, keepdims=True)
    var = jnp.mean((h1 - mean) ** 2, axis=0, keepdims=True)
    xs = jnp.maximum(
        (h1 - mean) * jax.lax.rsqrt(var + BN_EPS) * p["gamma"] + p["beta"], 0.0)
    w2_full = jnp.concatenate([p["w2s"], p["w2a"]], axis=0)
    x = jnp.concatenate([xs, action], axis=1)
    h2 = jnp.maximum(
        jnp.dot(bf(x), bf(w2_full), preferred_element_type=jnp.float32) + p["b2"],
        0.0)
    return jnp.dot(h2, p["w3"], preferred_element_type=jnp.float32) + p["b3"]


if __name__ == "__main__":
    state_size, action_size = 32, 8
    fcs1_units, fc2_units = 400, 300
    batch = 8

    key = jax.random.PRNGKey(0)
    k_state, k_action, k_params = jax.random.split(key, 3)

    state = jax.random.normal(k_state, (batch, state_size), jnp.float32)
    action = jax.random.normal(k_action, (batch, action_size), jnp.float32)

    params = init_params(k_params, state_size, action_size, fcs1_units, fc2_units)
    kparams = pad_params_for_kernel(params, state_size, action_size,
                                    fcs1_units, fc2_units)

    q = critic_forward(state, action, kparams)
    q = jax.block_until_ready(q)

    q_ref = critic_reference(state, action, params)
    assert q.shape == (batch, 1)
    assert jnp.allclose(q, q_ref, atol=2e-4, rtol=1e-3), (
        "mismatch vs reference, max abs err "
        f"{float(jnp.max(jnp.abs(q - q_ref)))}")

    print("KERNEL_OK")
</pallas_src>

<mosaic_0001>
module attributes {stable_mosaic.version = 11 : i64} {
  func.func @_critic_kernel(%arg0: memref<8x32xf32, #tpu.memory_space<vmem>>, %arg1: memref<8x8xf32, #tpu.memory_space<vmem>>, %arg2: memref<32x512xbf16, #tpu.memory_space<vmem>>, %arg3: memref<1x512xf32, #tpu.memory_space<vmem>>, %arg4: memref<1x512xf32, #tpu.memory_space<vmem>>, %arg5: memref<512x384xbf16, #tpu.memory_space<vmem>>, %arg6: memref<8x384xbf16, #tpu.memory_space<vmem>>, %arg7: memref<1x384xf32, #tpu.memory_space<vmem>>, %arg8: memref<1x384xf32, #tpu.memory_space<vmem>>, %arg9: memref<1x1xf32, #tpu.memory_space<vmem>>, %arg10: memref<8x1xf32, #tpu.memory_space<vmem>>) attributes {dimension_semantics = [], scalar_prefetch = 0 : i64, scratch_operands = 0 : i64, tpu.core_type = #tpu.core_type<tc>} {
    %c0 = arith.constant 0 : index
    %c0_0 = arith.constant 0 : index
    %0 = vector.load %arg0[%c0, %c0_0] : memref<8x32xf32, #tpu.memory_space<vmem>>, vector<8x32xf32>
    %1 = arith.truncf %0 : vector<8x32xf32> to vector<8x32xbf16>
    %c0_1 = arith.constant 0 : index
    %c0_2 = arith.constant 0 : index
    %2 = vector.load %arg2[%c0_1, %c0_2] : memref<32x512xbf16, #tpu.memory_space<vmem>>, vector<32x512xbf16>
    %cst = arith.constant dense<0.000000e+00> : vector<8x512xf32>
    %3 = tpu.matmul %1, %2, %cst {dimension_numbers = #tpu.dot_dimension_numbers<[1], [0], [0], [1], [0, 0, 1, 1], [], []>} : vector<8x32xbf16>, vector<32x512xbf16>, vector<8x512xf32> -> vector<8x512xf32>
    %cst_3 = arith.constant dense<0.000000e+00> : vector<512xf32>
    %4 = vector.multi_reduction <add>, %3, %cst_3 [0] : vector<8x512xf32> to vector<512xf32>
    %5 = vector.shape_cast %4 : vector<512xf32> to vector<1x512xf32>
    %cst_4 = arith.constant 1.250000e-01 : f32
    %6 = vector.broadcast %cst_4 : f32 to vector<1x512xf32>
    %7 = arith.mulf %5, %6 : vector<1x512xf32>
    %8 = vector.broadcast %7 : vector<1x512xf32> to vector<8x512xf32>
    %9 = arith.subf %3, %8 : vector<8x512xf32>
    %10 = arith.mulf %9, %9 : vector<8x512xf32>
    %cst_5 = arith.constant dense<0.000000e+00> : vector<512xf32>
    %11 = vector.multi_reduction <add>, %10, %cst_5 [0] : vector<8x512xf32> to vector<512xf32>
    %12 = vector.shape_cast %11 : vector<512xf32> to vector<1x512xf32>
    %cst_6 = arith.constant 1.250000e-01 : f32
    %13 = vector.broadcast %cst_6 : f32 to vector<1x512xf32>
    %14 = arith.mulf %12, %13 : vector<1x512xf32>
    %cst_7 = arith.constant 9.99999974E-6 : f32
    %15 = vector.broadcast %cst_7 : f32 to vector<1x512xf32>
    %16 = arith.addf %14, %15 : vector<1x512xf32>
    %17 = math.rsqrt %16 : vector<1x512xf32>
    %c0_8 = arith.constant 0 : index
    %c0_9 = arith.constant 0 : index
    %18 = vector.load %arg3[%c0_8, %c0_9] : memref<1x512xf32, #tpu.memory_space<vmem>>, vector<1x512xf32>
    %19 = arith.mulf %17, %18 : vector<1x512xf32>
    %20 = vector.broadcast %19 : vector<1x512xf32> to vector<8x512xf32>
    %21 = arith.mulf %9, %20 : vector<8x512xf32>
    %c0_10 = arith.constant 0 : index
    %c0_11 = arith.constant 0 : index
    %22 = vector.load %arg4[%c0_10, %c0_11] : memref<1x512xf32, #tpu.memory_space<vmem>>, vector<1x512xf32>
    %23 = vector.broadcast %22 : vector<1x512xf32> to vector<8x512xf32>
    %24 = arith.addf %21, %23 : vector<8x512xf32>
    %cst_12 = arith.constant 0.000000e+00 : f32
    %25 = vector.broadcast %cst_12 : f32 to vector<8x512xf32>
    %26 = arith.maximumf %24, %25 : vector<8x512xf32>
    %c0_13 = arith.constant 0 : index
    %c0_14 = arith.constant 0 : index
    %27 = vector.load %arg1[%c0_13, %c0_14] : memref<8x8xf32, #tpu.memory_space<vmem>>, vector<8x8xf32>
    %28 = arith.truncf %27 : vector<8x8xf32> to vector<8x8xbf16>
    %29 = arith.truncf %26 : vector<8x512xf32> to vector<8x512xbf16>
    %c0_15 = arith.constant 0 : index
    %c0_16 = arith.constant 0 : index
    %30 = vector.load %arg5[%c0_15, %c0_16] : memref<512x384xbf16, #tpu.memory_space<vmem>>, vector<512x384xbf16>
    %cst_17 = arith.constant dense<0.000000e+00> : vector<8x384xf32>
    %31 = tpu.matmul %29, %30, %cst_17 {dimension_numbers = #tpu.dot_dimension_numbers<[1], [0], [0], [1], [0, 0, 1, 1], [], []>} : vector<8x512xbf16>, vector<512x384xbf16>, vector<8x384xf32> -> vector<8x384xf32>
    %c0_18 = arith.constant 0 : index
    %c0_19 = arith.constant 0 : index
    %32 = vector.load %arg6[%c0_18, %c0_19] : memref<8x384xbf16, #tpu.memory_space<vmem>>, vector<8x384xbf16>
    %cst_20 = arith.constant dense<0.000000e+00> : vector<8x384xf32>
    %33 = tpu.matmul %28, %32, %cst_20 {dimension_numbers = #tpu.dot_dimension_numbers<[1], [0], [0], [1], [0, 0, 1, 1], [], []>} : vector<8x8xbf16>, vector<8x384xbf16>, vector<8x384xf32> -> vector<8x384xf32>
    %34 = arith.addf %31, %33 : vector<8x384xf32>
    %c0_21 = arith.constant 0 : index
    %c0_22 = arith.constant 0 : index
    %35 = vector.load %arg7[%c0_21, %c0_22] : memref<1x384xf32, #tpu.memory_space<vmem>>, vector<1x384xf32>
    %36 = vector.broadcast %35 : vector<1x384xf32> to vector<8x384xf32>
    %37 = arith.addf %34, %36 : vector<8x384xf32>
    %cst_23 = arith.constant 0.000000e+00 : f32
    %38 = vector.broadcast %cst_23 : f32 to vector<8x384xf32>
    %39 = arith.maximumf %37, %38 : vector<8x384xf32>
    %c0_24 = arith.constant 0 : index
    %c0_25 = arith.constant 0 : index
    %40 = vector.load %arg8[%c0_24, %c0_25] : memref<1x384xf32, #tpu.memory_space<vmem>>, vector<1x384xf32>
    %41 = vector.broadcast %40 : vector<1x384xf32> to vector<8x384xf32>
    %42 = arith.mulf %39, %41 : vector<8x384xf32>
    %cst_26 = arith.constant dense<0.000000e+00> : vector<8xf32>
    %43 = vector.multi_reduction <add>, %42, %cst_26 [1] : vector<8x384xf32> to vector<8xf32>
    %44 = vector.shape_cast %43 : vector<8xf32> to vector<8x1xf32>
    %c0_27 = arith.constant 0 : index
    %c0_28 = arith.constant 0 : index
    %45 = vector.load %arg9[%c0_27, %c0_28] : memref<1x1xf32, #tpu.memory_space<vmem>>, vector<1x1xf32>
    %46 = vector.broadcast %45 : vector<1x1xf32> to vector<8x1xf32>
    %47 = arith.addf %44, %46 : vector<8x1xf32>
    %c0_29 = arith.constant 0 : index
    %c0_30 = arith.constant 0 : index
    %48 = vector.load %arg10[%c0_29, %c0_30] : memref<8x1xf32, #tpu.memory_space<vmem>>, vector<8x1xf32>
    tpu.vector_store %arg10[%c0_29, %c0_30], %47 {strides = array<i32>} : memref<8x1xf32, #tpu.memory_space<vmem>>, vector<8x1xf32>,
    return
  }
}

</mosaic_0001>

<llo_original>
// kernel: tpu_custom_call.1
$region0: #{tpu_custom_call.1}
  #allocation0 [shape = 'u32[]', space=smem, size = 0x4, offset = 0x4, fixed_abs, tag = 'smem constant byte address 0x4 - core index']
  #allocation1 [shape = 'u32[144,128]{1,0:T(1,128)}', space=vmem, size = 0x12000, scoped, tag = 'internal scratch']
  #allocation2 [shape = 'f32[1,1]{1,0:T(1,128)S(1)}', space=vmem, size = 0x200, scoped, tag = 'scoped memory for tpu_custom_call.1']
  %s0 = inlined_call_operand.hbm [shape: f32[8,32], index: 0, kind: input, shape index: {}]
  %s1 = inlined_call_operand.hbm [shape: f32[8,8], index: 1, kind: input, shape index: {}]
  %s2 = inlined_call_operand.hbm [shape: bf16[32,512], index: 2, kind: input, shape index: {}]
  %s3 = inlined_call_operand.vmem [shape: f32[1,512], index: 3, kind: input, shape index: {}]
  %s4 = inlined_call_operand.vmem [shape: f32[1,512], index: 4, kind: input, shape index: {}]
  %s5 = inlined_call_operand.hbm [shape: bf16[512,384], index: 5, kind: input, shape index: {}]
  %s6 = inlined_call_operand.vmem [shape: bf16[8,384], index: 6, kind: input, shape index: {}]
  %s7 = inlined_call_operand.vmem [shape: f32[1,384], index: 7, kind: input, shape index: {}]
  %s8 = inlined_call_operand.vmem [shape: f32[1,384], index: 8, kind: input, shape index: {}]
  %s9 = inlined_call_operand.<no memory space> [shape: f32[1,1], index: 9, kind: input, shape index: {}]
  %s10 = inlined_call_operand.vmem [shape: f32[8,1], index: 10, kind: output, shape index: {}]
  %s11 = sld [smem:[#allocation0]]
  $region66: #{tpu_custom_call.1} parent=0
    _
  %s13 = ssub.s32 1, %s11
  %s14 = scalar_select 0, %s13, %s11
  %v15 = vstv %s9
  %16 = vst [vmem:[#allocation2] sm:$0x1] %v15
  $region1: #{tpu_custom_call.1} parent=0
    #allocation3 [shape = 'u8[4096]{0}', space=vmem, size = 0x1000, scoped, tag = 'input window, operand 0, single buffered']
    #allocation4 [shape = 's32[1]{0}', space=sflag, size = 0x4, scoped, tag = 'scoped memory for tpu_custom_call.1']
    #allocation5 [shape = 'u8[4096]{0}', space=vmem, size = 0x1000, scoped, tag = 'input window, operand 1, single buffered']
    #allocation6 [shape = 's32[1]{0}', space=sflag, size = 0x4, scoped, tag = 'scoped memory for tpu_custom_call.1']
    #allocation7 [shape = 'u8[32768]{0}', space=vmem, size = 0x8000, scoped, tag = 'input window, operand 2, single buffered']
    #allocation8 [shape = 'u8[393216]{0}', space=vmem, size = 0x60000, scoped, tag = 'input window, operand 5, single buffered']
    #allocation9 [shape = 's32[1]{0}', space=sflag, size = 0x4, scoped, tag = 'scoped memory for tpu_custom_call.1']
    %17 = vsyncpa [#allocation4], 0
    %18 = vsyncpa [#allocation6], 0
    %19 = vsyncpa [#allocation9], 0
    // Predicated region
    $region2: #{tpu_custom_call.1} parent=1 // pred_check
      _
    $region3: #{tpu_custom_call.1} parent=1 // pred_check_branch
      %21 = sbr.rel (0) target = $region5
    $region4: #{tpu_custom_call.1} parent=1 // pred_region
      %s23 = ssub.s32 128, 128
      %24 = vsyncadd [#allocation4], %s23
      %s26 = sshll.u32 [#allocation3], 4
      %s27 = int_to_ptr.vmem [resolvable:$true] %s26
      %29 = dma.hbm_to_vmem [thread:$0]  %s0, 128, %s27, [#allocation4]
    $region5: #{tpu_custom_call.1} parent=1 // pred_fallthru
      _
    // Predicated region
    $region6: #{tpu_custom_call.1} parent=1 // pred_check
      _
    $region7: #{tpu_custom_call.1} parent=1 // pred_check_branch
      %31 = sbr.rel (0) target = $region9
    $region8: #{tpu_custom_call.1} parent=1 // pred_region
      %s33 = ssub.s32 128, 128
      %34 = vsyncadd [#allocation6], %s33
      %s36 = sshll.u32 [#allocation5], 4
      %s37 = int_to_ptr.vmem [resolvable:$true] %s36
      %39 = dma.hbm_to_vmem [thread:$0]  %s1, 128, %s37, [#allocation6]
    $region9: #{tpu_custom_call.1} parent=1 // pred_fallthru
      _
    // Predicated region
    $region10: #{tpu_custom_call.1} parent=1 // pred_check
      _
    $region11: #{tpu_custom_call.1} parent=1 // pred_check_branch
      %41 = sbr.rel (0) target = $region13
    $region12: #{tpu_custom_call.1} parent=1 // pred_region
      %s43 = ssub.s32 1024, 1024
      %44 = vsyncadd [#allocation6], %s43
      %s45 = sshll.u32 [#allocation7], 4
      %s46 = int_to_ptr.vmem [resolvable:$true] %s45
      %51 = dma.hbm_to_vmem [thread:$0]  %s2, 1024, %s46, [#allocation6], 256, 256, 16
    $region13: #{tpu_custom_call.1} parent=1 // pred_fallthru
      _
    // Predicated region
    $region14: #{tpu_custom_call.1} parent=1 // pred_check
      _
    $region15: #{tpu_custom_call.1} parent=1 // pred_check_branch
      %53 = sbr.rel (0) target = $region17
    $region16: #{tpu_custom_call.1} parent=1 // pred_region
      _
    $region17: #{tpu_custom_call.1} parent=1 // pred_fallthru
      _
    // Predicated region
    $region18: #{tpu_custom_call.1} parent=1 // pred_check
      _
    $region19: #{tpu_custom_call.1} parent=1 // pred_check_branch
      %55 = sbr.rel (0) target = $region21
    $region20: #{tpu_custom_call.1} parent=1 // pred_region
      _
    $region21: #{tpu_custom_call.1} parent=1 // pred_fallthru
      _
    // Predicated region
    $region22: #{tpu_custom_call.1} parent=1 // pred_check
      _
    $region23: #{tpu_custom_call.1} parent=1 // pred_check_branch
      %57 = sbr.rel (0) target = $region25
    $region24: #{tpu_custom_call.1} parent=1 // pred_region
      %s59 = ssub.s32 12288, 12288
      %60 = vsyncadd [#allocation9], %s59
      %s61 = sshll.u32 [#allocation8], 4
      %s62 = int_to_ptr.vmem [resolvable:$true] %s61
      %67 = dma.hbm_to_vmem [thread:$0]  %s5, 12288, %s62, [#allocation9], 192, 192, 12
    $region25: #{tpu_custom_call.1} parent=1 // pred_fallthru
      _
    // Predicated region
    $region26: #{tpu_custom_call.1} parent=1 // pred_check
      _
    $region27: #{tpu_custom_call.1} parent=1 // pred_check_branch
      %69 = sbr.rel (0) target = $region29
    $region28: #{tpu_custom_call.1} parent=1 // pred_region
      _
    $region29: #{tpu_custom_call.1} parent=1 // pred_fallthru
      _
    // Predicated region
    $region30: #{tpu_custom_call.1} parent=1 // pred_check
      _
    $region31: #{tpu_custom_call.1} parent=1 // pred_check_branch
      %71 = sbr.rel (0) target = $region33
    $region32: #{tpu_custom_call.1} parent=1 // pred_region
      _
    $region33: #{tpu_custom_call.1} parent=1 // pred_fallthru
      _
    // Predicated region
    $region34: #{tpu_custom_call.1} parent=1 // pred_check
      _
    $region35: #{tpu_custom_call.1} parent=1 // pred_check_branch
      %73 = sbr.rel (0) target = $region37
    $region36: #{tpu_custom_call.1} parent=1 // pred_region
      _
    $region37: #{tpu_custom_call.1} parent=1 // pred_fallthru
      _
    // Predicated region
    $region38: #{tpu_custom_call.1} parent=1 // pred_check
      _
    $region39: #{tpu_custom_call.1} parent=1 // pred_check_branch
      %75 = sbr.rel (0) target = $region41
    $region40: #{tpu_custom_call.1} parent=1 // pred_region
      _
    $region41: #{tpu_custom_call.1} parent=1 // pred_fallthru
      _
    // Predicated region
    $region42: #{tpu_custom_call.1} parent=1 // pred_check
      _
    $region43: #{tpu_custom_call.1} parent=1 // pred_check_branch
      %77 = sbr.rel (0) target = $region45
    $region44: #{tpu_custom_call.1} parent=1 // pred_region
      %78 = dma.done [#allocation4], 128
    $region45: #{tpu_custom_call.1} parent=1 // pred_fallthru
      _
    // Predicated region
    $region46: #{tpu_custom_call.1} parent=1 // pred_check
      _
    $region47: #{tpu_custom_call.1} parent=1 // pred_check_branch
      %80 = sbr.rel (0) target = $region49
    $region48: #{tpu_custom_call.1} parent=1 // pred_region
      %81 = dma.done [#allocation6], 128
    $region49: #{tpu_custom_call.1} parent=1 // pred_fallthru
      _
    // Predicated region
    $region50: #{tpu_custom_call.1} parent=1 // pred_check
      _
    $region51: #{tpu_custom_call.1} parent=1 // pred_check_branch
      %83 = sbr.rel (0) target = $region53
    $region52: #{tpu_custom_call.1} parent=1 // pred_region
      %84 = dma.done [#allocation6], 1024
    $region53: #{tpu_custom_call.1} parent=1 // pred_fallthru
      _
    // Predicated region
    $region54: #{tpu_custom_call.1} parent=1 // pred_check
      _
    $region55: #{tpu_custom_call.1} parent=1 // pred_check_branch
      %86 = sbr.rel (0) target = $region57
    $region56: #{tpu_custom_call.1} parent=1 // pred_region
      %87 = dma.done [#allocation9], 12288
    $region57: #{tpu_custom_call.1} parent=1 // pred_fallthru
      _
    %v89 = vld [vmem:[#allocation3] sm:$0xff]
    %v90 = vpack.c.bf16 %v89, %v89
    %v91 = vld [vmem:[#allocation7] sm:$0xff]
    %v92 = vld [vmem:[#allocation7 + $0x8] sm:$0xff]
    %v93 = vld [vmem:[#allocation7 + $0x10] sm:$0xff]
    %v94 = vld [vmem:[#allocation7 + $0x18] sm:$0xff]
    %v95 = vld [vmem:[#allocation7 + $0x20] sm:$0xff]
    %v96 = vld [vmem:[#allocation7 + $0x28] sm:$0xff]
    %v97 = vld [vmem:[#allocation7 + $0x30] sm:$0xff]
    %v98 = vld [vmem:[#allocation7 + $0x38] sm:$0xff]
    %v107 = vunpack.c.l.b16 %v91
    %v108 = vunpack.c.h.b16 %v91
    %v109 = vunpack.c.l.b16 %v92
    %v110 = vunpack.c.h.b16 %v92
    %v111 = vunpack.c.l.b16 %v93
    %v112 = vunpack.c.h.b16 %v93
    %v113 = vunpack.c.l.b16 %v94
    %v114 = vunpack.c.h.b16 %v94
    %v115 = vunpack.c.l.b16 %v95
    %v116 = vunpack.c.h.b16 %v95
    %v117 = vunpack.c.l.b16 %v96
    %v118 = vunpack.c.h.b16 %v96
    %v119 = vunpack.c.l.b16 %v97
    %v120 = vunpack.c.h.b16 %v97
    %v121 = vunpack.c.l.b16 %v98
    %v122 = vunpack.c.h.b16 %v98
    %v123 = vpack.c.b16 %v111, %v107
    %v124 = vpack.c.b16 %v112, %v108
    %v125 = vpack.c.b16 %v113, %v109
    %v126 = vpack.c.b16 %v114, %v110
    %v127 = vpack.c.b16 %v119, %v115
    %v128 = vpack.c.b16 %v120, %v116
    %v129 = vpack.c.b16 %v121, %v117
    %v130 = vpack.c.b16 %v122, %v118
    %vm139 = vcmask 261120
    %v141 = vsel %vm139, %v90, 0
    %143 = vmatprep.subr.bf16.mxu0 %v124
    %144 = vmatpush1.bf16.msra.mxu0 %v123
    %145 = vmatprep.subr.bf16.mxu0 %v128
    %146 = vmatpush1.bf16.msra.mxu0 %v127
    %147 = vmatprep.subr.bf16.mxu0 0
    %148 = vmatpush1.bf16.msra.mxu0 0
    %149 = vmatprep.subr.bf16.mxu0 0
    %150 = vmatpush1.bf16.msra.mxu0 0
    %151 = vmatprep.subr.bf16.mxu0 0
    %152 = vmatpush1.bf16.msra.mxu0 0
    %153 = vmatprep.subr.bf16.mxu0 0
    %154 = vmatpush1.bf16.msra.mxu0 0
    %155 = vmatprep.subr.bf16.mxu0 0
    %156 = vmatpush1.bf16.msra.mxu0 0
    %157 = vmatprep.subr.bf16.mxu0 0
    %158 = vmatpush1.bf16.msra.mxu0 0
    %159 = vmatprep.subr.bf16.mxu0 0
    %160 = vmatpush1.bf16.msra.mxu0 0
    %161 = vmatprep.subr.bf16.mxu0 0
    %162 = vmatpush1.bf16.msra.mxu0 0
    %163 = vmatprep.subr.bf16.mxu0 0
    %164 = vmatpush1.bf16.msra.mxu0 0
    %165 = vmatprep.subr.bf16.mxu0 0
    %166 = vmatpush1.bf16.msra.mxu0 0
    %167 = vmatprep.subr.bf16.mxu0 0
    %168 = vmatpush1.bf16.msra.mxu0 0
    %169 = vmatprep.subr.bf16.mxu0 0
    %170 = vmatpush1.bf16.msra.mxu0 0
    %171 = vmatprep.subr.bf16.mxu0 0
    %172 = vmatpush1.bf16.msra.mxu0 0
    %173 = vmatprep.subr.bf16.mxu0 0
    %174 = vmatpush1.bf16.msra.mxu0 0
    %175 = vmatprep.mubr.bf16.mxu0 0
    %176 = vmatmul.mubr.bf16.gmra.mrb[0].mxu0 %v141
    %v177 = vpop.f32.mrb[0].mxu0
    %v178 = vadd.f32 0.0, %v177
    %v179 = vpop.f32.mrb[0].mxu0
    %v180 = vadd.f32 0.0, %v179
    %v181 = vpop.f32.mrb[0].mxu0
    %v182 = vpop.f32.mrb[0].mxu0
    %183 = vdwg.mxu0
    %184 = vmatprep.subr.bf16.mxu0 %v126
    %185 = vmatpush1.bf16.msra.mxu0 %v125
    %186 = vmatprep.subr.bf16.mxu0 %v130
    %187 = vmatpush1.bf16.msra.mxu0 %v129
    %188 = vmatprep.subr.bf16.mxu0 0
    %189 = vmatpush1.bf16.msra.mxu0 0
    %190 = vmatprep.subr.bf16.mxu0 0
    %191 = vmatpush1.bf16.msra.mxu0 0
    %192 = vmatprep.subr.bf16.mxu0 0
    %193 = vmatpush1.bf16.msra.mxu0 0
    %194 = vmatprep.subr.bf16.mxu0 0
    %195 = vmatpush1.bf16.msra.mxu0 0
    %196 = vmatprep.subr.bf16.mxu0 0
    %197 = vmatpush1.bf16.msra.mxu0 0
    %198 = vmatprep.subr.bf16.mxu0 0
    %199 = vmatpush1.bf16.msra.mxu0 0
    %200 = vmatprep.subr.bf16.mxu0 0
    %201 = vmatpush1.bf16.msra.mxu0 0
    %202 = vmatprep.subr.bf16.mxu0 0
    %203 = vmatpush1.bf16.msra.mxu0 0
    %204 = vmatprep.subr.bf16.mxu0 0
    %205 = vmatpush1.bf16.msra.mxu0 0
    %206 = vmatprep.subr.bf16.mxu0 0
    %207 = vmatpush1.bf16.msra.mxu0 0
    %208 = vmatprep.subr.bf16.mxu0 0
    %209 = vmatpush1.bf16.msra.mxu0 0
    %210 = vmatprep.subr.bf16.mxu0 0
    %211 = vmatpush1.bf16.msra.mxu0 0
    %212 = vmatprep.subr.bf16.mxu0 0
    %213 = vmatpush1.bf16.msra.mxu0 0
    %214 = vmatprep.subr.bf16.mxu0 0
    %215 = vmatpush1.bf16.msra.mxu0 0
    %216 = vmatprep.mubr.bf16.mxu0 0
    %217 = vmatmul.mubr.bf16.gmra.mrb[0].mxu0 %v141
    %v218 = vpop.f32.mrb[0].mxu0
    %v219 = vadd.f32 0.0, %v218
    %v220 = vpop.f32.mrb[0].mxu0
    %v221 = vadd.f32 0.0, %v220
    %v222 = vpop.f32.mrb[0].mxu0
    %v223 = vpop.f32.mrb[0].mxu0
    %224 = vdwg.mxu0
    %v225 = vrot.slane %v178, 4
    %v226 = vadd.f32 %v178, %v225
    %v227 = vrot.slane %v226, 2
    %v228 = vadd.f32 %v226, %v227
    %v229 = vrot.slane %v228, 1
    %v230 = vadd.f32 %v228, %v229
    %v231 = vrot.slane %v180, 4
    %v232 = vadd.f32 %v180, %v231
    %v233 = vrot.slane %v232, 2
    %v234 = vadd.f32 %v232, %v233
    %v235 = vrot.slane %v234, 1
    %v236 = vadd.f32 %v234, %v235
    %v237 = vrot.slane %v219, 4
    %v238 = vadd.f32 %v219, %v237
    %v239 = vrot.slane %v238, 2
    %v240 = vadd.f32 %v238, %v239
    %v241 = vrot.slane %v240, 1
    %v242 = vadd.f32 %v240, %v241
    %v243 = vrot.slane %v221, 4
    %v244 = vadd.f32 %v221, %v243
    %v245 = vrot.slane %v244, 2
    %v246 = vadd.f32 %v244, %v245
    %v247 = vrot.slane %v246, 1
    %v248 = vadd.f32 %v246, %v247
    %v249 = vmul.f32 %v230, 0.125
    %v250 = vmul.f32 %v236, 0.125
    %v251 = vmul.f32 %v242, 0.125
    %v252 = vmul.f32 %v248, 0.125
    %v253 = vsub.f32 %v178, %v249
    %v254 = vsub.f32 %v180, %v250
    %v255 = vsub.f32 %v219, %v251
    %v256 = vsub.f32 %v221, %v252
    %v257 = vmul.f32 %v253, %v253
    %v258 = vmul.f32 %v254, %v254
    %v259 = vmul.f32 %v255, %v255
    %v260 = vmul.f32 %v256, %v256
    %v261 = vrot.slane %v257, 4
    %v262 = vadd.f32 %v257, %v261
    %v263 = vrot.slane %v262, 2
    %v264 = vadd.f32 %v262, %v263
    %v265 = vrot.slane %v264, 1
    %v266 = vadd.f32 %v264, %v265
    %v267 = vrot.slane %v258, 4
    %v268 = vadd.f32 %v258, %v267
    %v269 = vrot.slane %v268, 2
    %v270 = vadd.f32 %v268, %v269
    %v271 = vrot.slane %v270, 1
    %v272 = vadd.f32 %v270, %v271
    %v273 = vrot.slane %v259, 4
    %v274 = vadd.f32 %v259, %v273
    %v275 = vrot.slane %v274, 2
    %v276 = vadd.f32 %v274, %v275
    %v277 = vrot.slane %v276, 1
    %v278 = vadd.f32 %v276, %v277
    %v279 = vrot.slane %v260, 4
    %v280 = vadd.f32 %v260, %v279
    %v281 = vrot.slane %v280, 2
    %v282 = vadd.f32 %v280, %v281
    %v283 = vrot.slane %v282, 1
    %v284 = vadd.f32 %v282, %v283
    %v285 = vmul.f32 %v266, 0.125
    %v286 = vmul.f32 %v272, 0.125
    %v287 = vmul.f32 %v278, 0.125
    %v288 = vmul.f32 %v284, 0.125
    %v289 = vadd.f32 %v285, 1e-05
    %v290 = vadd.f32 %v286, 1e-05
    %v291 = vadd.f32 %v287, 1e-05
    %v292 = vadd.f32 %v288, 1e-05
    %v293 = vrsqrt.pop %v289
    %v294 = vrsqrt.pop %v290
    %v295 = vrsqrt.pop %v291
    %v296 = vrsqrt.pop %v292
    %v297 = vld [vmem:[%s3] sm:$0xf]
    %v299 = vlaneseq
    %v300 = vshrl.u32 %v299, 7
    %v301 = vsub.s32 0, %v300
    %v302 = vrot.slane %v297, %v301
    %v303 = vlaneseq
    %v304 = vshrl.u32 %v303, 7
    %v305 = vsub.s32 1, %v304
    %v306 = vrot.slane %v297, %v305
    %v307 = vlaneseq
    %v308 = vshrl.u32 %v307, 7
    %v309 = vsub.s32 2, %v308
    %v310 = vrot.slane %v297, %v309
    %v311 = vlaneseq
    %v312 = vshrl.u32 %v311, 7
    %v313 = vsub.s32 3, %v312
    %v314 = vrot.slane %v297, %v313
    %v319 = vmul.f32 %v293, %v302
    %v320 = vmul.f32 %v294, %v306
    %v321 = vmul.f32 %v295, %v310
    %v322 = vmul.f32 %v296, %v314
    %v323 = vlaneseq
    %v324 = vshrl.u32 %v323, 7
    %v325 = vsub.s32 0, %v324
    %v326 = vrot.slane %v319, %v325
    %v327 = vlaneseq
    %v328 = vshrl.u32 %v327, 7
    %v329 = vsub.s32 0, %v328
    %v330 = vrot.slane %v320, %v329
    %v331 = vlaneseq
    %v332 = vshrl.u32 %v331, 7
    %v333 = vsub.s32 0, %v332
    %v334 = vrot.slane %v321, %v333
    %v335 = vlaneseq
    %v336 = vshrl.u32 %v335, 7
    %v337 = vsub.s32 0, %v336
    %v338 = vrot.slane %v322, %v337
    %v339 = vmul.f32 %v253, %v326
    %v340 = vmul.f32 %v254, %v330
    %v341 = vmul.f32 %v255, %v334
    %v342 = vmul.f32 %v256, %v338
    %v343 = vld [vmem:[%s4] sm:$0xf]
    %v345 = vlaneseq
    %v346 = vshrl.u32 %v345, 7
    %v347 = vsub.s32 0, %v346
    %v348 = vrot.slane %v343, %v347
    %v349 = vlaneseq
    %v350 = vshrl.u32 %v349, 7
    %v351 = vsub.s32 1, %v350
    %v352 = vrot.slane %v343, %v351
    %v353 = vlaneseq
    %v354 = vshrl.u32 %v353, 7
    %v355 = vsub.s32 2, %v354
    %v356 = vrot.slane %v343, %v355
    %v357 = vlaneseq
    %v358 = vshrl.u32 %v357, 7
    %v359 = vsub.s32 3, %v358
    %v360 = vrot.slane %v343, %v359
    %v365 = vadd.f32 %v339, %v348
    %v366 = vadd.f32 %v340, %v352
    %v367 = vadd.f32 %v341, %v356
    %v368 = vadd.f32 %v342, %v360
    %v369 = vmax.f32 %v365, 0.0
    %v370 = vmax.f32 %v366, 0.0
    %v371 = vmax.f32 %v367, 0.0
    %v372 = vmax.f32 %v368, 0.0
    %v373 = vld [vmem:[#allocation5] sm:$0xff]
    %v374 = vpack.c.bf16 %v373, %v373
    %v375 = vpack.c.bf16 %v369, %v369
    %v376 = vpack.c.bf16 %v370, %v370
    %v377 = vpack.c.bf16 %v371, %v371
    %v378 = vpack.c.bf16 %v372, %v372
    %v379 = vld [vmem:[#allocation8] sm:$0xff]
    %v380 = vld [vmem:[#allocation8 + $0x8] sm:$0xf]
    %v381 = vld [vmem:[#allocation8 + $0xc] sm:$0xff]
    %v382 = vld [vmem:[#allocation8 + $0x14] sm:$0xf]
    %v383 = vld [vmem:[#allocation8 + $0x18] sm:$0xff]
    %v384 = vld [vmem:[#allocation8 + $0x20] sm:$0xf]
    %v385 = vld [vmem:[#allocation8 + $0x24] sm:$0xff]
    %v386 = vld [vmem:[#allocation8 + $0x2c] sm:$0xf]
    %v387 = vld [vmem:[#allocation8 + $0x30] sm:$0xff]
    %v388 = vld [vmem:[#allocation8 + $0x38] sm:$0xf]
    %v389 = vld [vmem:[#allocation8 + $0x3c] sm:$0xff]
    %v390 = vld [vmem:[#allocation8 + $0x44] sm:$0xf]
    %v391 = vld [vmem:[#allocation8 + $0x48] sm:$0xff]
    %v392 = vld [vmem:[#allocation8 + $0x50] sm:$0xf]
    %v393 = vld [vmem:[#allocation8 + $0x54] sm:$0xff]
    %v394 = vld [vmem:[#allocation8 + $0x5c] sm:$0xf]
    %v395 = vld [vmem:[#allocation8 + $0x60] sm:$0xff]
    %v396 = vld [vmem:[#allocation8 + $0x68] sm:$0xf]
    %v397 = vld [vmem:[#allocation8 + $0x6c] sm:$0xff]
    %v398 = vld [vmem:[#allocation8 + $0x74] sm:$0xf]
    %v399 = vld [vmem:[#allocation8 + $0x78] sm:$0xff]
    %v400 = vld [vmem:[#allocation8 + $0x80] sm:$0xf]
    %v401 = vld [vmem:[#allocation8 + $0x84] sm:$0xff]
    %v402 = vld [vmem:[#allocation8 + $0x8c] sm:$0xf]
    %v403 = vld [vmem:[#allocation8 + $0x90] sm:$0xff]
    %v404 = vld [vmem:[#allocation8 + $0x98] sm:$0xf]
    %v405 = vld [vmem:[#allocation8 + $0x9c] sm:$0xff]
    %v406 = vld [vmem:[#allocation8 + $0xa4] sm:$0xf]
    %v407 = vld [vmem:[#allocation8 + $0xa8] sm:$0xff]
    %v408 = vld [vmem:[#allocation8 + $0xb0] sm:$0xf]
    %v409 = vld [vmem:[#allocation8 + $0xb4] sm:$0xff]
    %v410 = vld [vmem:[#allocation8 + $0xbc] sm:$0xf]
    %v411 = vld [vmem:[#allocation8 + $0xc0] sm:$0xff]
    %v412 = vld [vmem:[#allocation8 + $0xc8] sm:$0xf]
    %v413 = vld [vmem:[#allocation8 + $0xcc] sm:$0xff]
    %v414 = vld [vmem:[#allocation8 + $0xd4] sm:$0xf]
    %v415 = vld [vmem:[#allocation8 + $0xd8] sm:$0xff]
    %v416 = vld [vmem:[#allocation8 + $0xe0] sm:$0xf]
    %v417 = vld [vmem:[#allocation8 + $0xe4] sm:$0xff]
    %v418 = vld [vmem:[#allocation8 + $0xec] sm:$0xf]
    %v419 = vld [vmem:[#allocation8 + $0xf0] sm:$0xff]
    %v420 = vld [vmem:[#allocation8 + $0xf8] sm:$0xf]
    %v421 = vld [vmem:[#allocation8 + $0xfc] sm:$0xff]
    %v422 = vld [vmem:[#allocation8 + $0x104] sm:$0xf]
    %v423 = vld [vmem:[#allocation8 + $0x108] sm:$0xff]
    %v424 = vld [vmem:[#allocation8 + $0x110] sm:$0xf]
    %v425 = vld [vmem:[#allocation8 + $0x114] sm:$0xff]
    %v426 = vld [vmem:[#allocation8 + $0x11c] sm:$0xf]
    %v427 = vld [vmem:[#allocation8 + $0x120] sm:$0xff]
    %v428 = vld [vmem:[#allocation8 + $0x128] sm:$0xf]
    %v429 = vld [vmem:[#allocation8 + $0x12c] sm:$0xff]
    %v430 = vld [vmem:[#allocation8 + $0x134] sm:$0xf]
    %v431 = vld [vmem:[#allocation8 + $0x138] sm:$0xff]
    %v432 = vld [vmem:[#allocation8 + $0x140] sm:$0xf]
    %v433 = vld [vmem:[#allocation8 + $0x144] sm:$0xff]
    %v434 = vld [vmem:[#allocation8 + $0x14c] sm:$0xf]
    %v435 = vld [vmem:[#allocation8 + $0x150] sm:$0xff]
    %v436 = vld [vmem:[#allocation8 + $0x158] sm:$0xf]
    %v437 = vld [vmem:[#allocation8 + $0x15c] sm:$0xff]
    %v438 = vld [vmem:[#allocation8 + $0x164] sm:$0xf]
    %v439 = vld [vmem:[#allocation8 + $0x168] sm:$0xff]
    %v440 = vld [vmem:[#allocation8 + $0x170] sm:$0xf]
    %v441 = vld [vmem:[#allocation8 + $0x174] sm:$0xff]
    %v442 = vld [vmem:[#allocation8 + $0x17c] sm:$0xf]
    %v443 = vld [vmem:[#allocation8 + $0x180] sm:$0xff]
    %v444 = vld [vmem:[#allocation8 + $0x188] sm:$0xf]
    %v445 = vld [vmem:[#allocation8 + $0x18c] sm:$0xff]
    %v446 = vld [vmem:[#allocation8 + $0x194] sm:$0xf]
    %v447 = vld [vmem:[#allocation8 + $0x198] sm:$0xff]
    %v448 = vld [vmem:[#allocation8 + $0x1a0] sm:$0xf]
    %v449 = vld [vmem:[#allocation8 + $0x1a4] sm:$0xff]
    %v450 = vld [vmem:[#allocation8 + $0x1ac] sm:$0xf]
    %v451 = vld [vmem:[#allocation8 + $0x1b0] sm:$0xff]
    %v452 = vld [vmem:[#allocation8 + $0x1b8] sm:$0xf]
    %v453 = vld [vmem:[#allocation8 + $0x1bc] sm:$0xff]
    %v454 = vld [vmem:[#allocation8 + $0x1c4] sm:$0xf]
    %v455 = vld [vmem:[#allocation8 + $0x1c8] sm:$0xff]
    %v456 = vld [vmem:[#allocation8 + $0x1d0] sm:$0xf]
    %v457 = vld [vmem:[#allocation8 + $0x1d4] sm:$0xff]
    %v458 = vld [vmem:[#allocation8 + $0x1dc] sm:$0xf]
    %v459 = vld [vmem:[#allocation8 + $0x1e0] sm:$0xff]
    %v460 = vld [vmem:[#allocation8 + $0x1e8] sm:$0xf]
    %v461 = vld [vmem:[#allocation8 + $0x1ec] sm:$0xff]
    %v462 = vld [vmem:[#allocation8 + $0x1f4] sm:$0xf]
    %v463 = vld [vmem:[#allocation8 + $0x1f8] sm:$0xff]
    %v464 = vld [vmem:[#allocation8 + $0x200] sm:$0xf]
    %v465 = vld [vmem:[#allocation8 + $0x204] sm:$0xff]
    %v466 = vld [vmem:[#allocation8 + $0x20c] sm:$0xf]
    %v467 = vld [vmem:[#allocation8 + $0x210] sm:$0xff]
    %v468 = vld [vmem:[#allocation8 + $0x218] sm:$0xf]
    %v469 = vld [vmem:[#allocation8 + $0x21c] sm:$0xff]
    %v470 = vld [vmem:[#allocation8 + $0x224] sm:$0xf]
    %v471 = vld [vmem:[#allocation8 + $0x228] sm:$0xff]
    %v472 = vld [vmem:[#allocation8 + $0x230] sm:$0xf]
    %v473 = vld [vmem:[#allocation8 + $0x234] sm:$0xff]
    %v474 = vld [vmem:[#allocation8 + $0x23c] sm:$0xf]
    %v475 = vld [vmem:[#allocation8 + $0x240] sm:$0xff]
    %v476 = vld [vmem:[#allocation8 + $0x248] sm:$0xf]
    %v477 = vld [vmem:[#allocation8 + $0x24c] sm:$0xff]
    %v478 = vld [vmem:[#allocation8 + $0x254] sm:$0xf]
    %v479 = vld [vmem:[#allocation8 + $0x258] sm:$0xff]
    %v480 = vld [vmem:[#allocation8 + $0x260] sm:$0xf]
    %v481 = vld [vmem:[#allocation8 + $0x264] sm:$0xff]
    %v482 = vld [vmem:[#allocation8 + $0x26c] sm:$0xf]
    %v483 = vld [vmem:[#allocation8 + $0x270] sm:$0xff]
    %v484 = vld [vmem:[#allocation8 + $0x278] sm:$0xf]
    %v485 = vld [vmem:[#allocation8 + $0x27c] sm:$0xff]
    %v486 = vld [vmem:[#allocation8 + $0x284] sm:$0xf]
    %v487 = vld [vmem:[#allocation8 + $0x288] sm:$0xff]
    %v488 = vld [vmem:[#allocation8 + $0x290] sm:$0xf]
    %v489 = vld [vmem:[#allocation8 + $0x294] sm:$0xff]
    %v490 = vld [vmem:[#allocation8 + $0x29c] sm:$0xf]
    %v491 = vld [vmem:[#allocation8 + $0x2a0] sm:$0xff]
    %v492 = vld [vmem:[#allocation8 + $0x2a8] sm:$0xf]
    %v493 = vld [vmem:[#allocation8 + $0x2ac] sm:$0xff]
    %v494 = vld [vmem:[#allocation8 + $0x2b4] sm:$0xf]
    %v495 = vld [vmem:[#allocation8 + $0x2b8] sm:$0xff]
    %v496 = vld [vmem:[#allocation8 + $0x2c0] sm:$0xf]
    %v497 = vld [vmem:[#allocation8 + $0x2c4] sm:$0xff]
    %v498 = vld [vmem:[#allocation8 + $0x2cc] sm:$0xf]
    %v499 = vld [vmem:[#allocation8 + $0x2d0] sm:$0xff]
    %v500 = vld [vmem:[#allocation8 + $0x2d8] sm:$0xf]
    %v501 = vld [vmem:[#allocation8 + $0x2dc] sm:$0xff]
    %v502 = vld [vmem:[#allocation8 + $0x2e4] sm:$0xf]
    %v503 = vld [vmem:[#allocation8 + $0x2e8] sm:$0xff]
    %v504 = vld [vmem:[#allocation8 + $0x2f0] sm:$0xf]
    %v505 = vld [vmem:[#allocation8 + $0x2f4] sm:$0xff]
    %v506 = vld [vmem:[#allocation8 + $0x2fc] sm:$0xf]
    %v507 = vld [vmem:[%s6] sm:$0xff]
    %v508 = vld [vmem:[%s6 + $0x8] sm:$0xf]
    %v511 = vunpack.c.l.b16 %v507
    %v512 = vunpack.c.h.b16 %v507
    %v513 = vunpack.c.l.b16 %v508
    %v514 = vpack.c.b16 %v511, %v511
    %v515 = vpack.c.b16 %v512, %v512
    %v516 = vpack.c.b16 %v513, %v513
    %vm517 = vcmask 64512
    %v519 = vsel %vm517, %v374, 0
    %vm521 = vcmask 1043456
    %v523 = vsel %vm521, %v514, 0
    %v526 = vsel %vm521, %v515, 0
    %v529 = vsel %vm521, %v516, 0
    %531 = vmatprep.subr.bf16.mxu0 %v526
    %532 = vmatpush1.bf16.msra.mxu0 %v523
    %533 = vmatprep.subr.bf16.mxu0 0
    %534 = vmatpush1.bf16.msra.mxu0 0
    %535 = vmatprep.subr.bf16.mxu0 0
    %536 = vmatpush1.bf16.msra.mxu0 0
    %537 = vmatprep.subr.bf16.mxu0 0
    %538 = vmatpush1.bf16.msra.mxu0 0
    %539 = vmatprep.subr.bf16.mxu0 0
    %540 = vmatpush1.bf16.msra.mxu0 0
    %541 = vmatprep.subr.bf16.mxu0 0
    %542 = vmatpush1.bf16.msra.mxu0 0
    %543 = vmatprep.subr.bf16.mxu0 0
    %544 = vmatpush1.bf16.msra.mxu0 0
    %545 = vmatprep.subr.bf16.mxu0 0
    %546 = vmatpush1.bf16.msra.mxu0 0
    %547 = vmatprep.subr.bf16.mxu0 0
    %548 = vmatpush1.bf16.msra.mxu0 0
    %549 = vmatprep.subr.bf16.mxu0 0
    %550 = vmatpush1.bf16.msra.mxu0 0
    %551 = vmatprep.subr.bf16.mxu0 0
    %552 = vmatpush1.bf16.msra.mxu0 0
    %553 = vmatprep.subr.bf16.mxu0 0
    %554 = vmatpush1.bf16.msra.mxu0 0
    %555 = vmatprep.subr.bf16.mxu0 0
    %556 = vmatpush1.bf16.msra.mxu0 0
    %557 = vmatprep.subr.bf16.mxu0 0
    %558 = vmatpush1.bf16.msra.mxu0 0
    %559 = vmatprep.subr.bf16.mxu0 0
    %560 = vmatpush1.bf16.msra.mxu0 0
    %561 = vmatprep.subr.bf16.mxu0 0
    %562 = vmatpush1.bf16.msra.mxu0 0
    %563 = vmatprep.mubr.bf16.mxu0 0
    %564 = vmatmul.mubr.bf16.gmra.mrb[0].mxu0 %v519
    %v565 = vpop.f32.mrb[0].mxu0
    %v566 = vadd.f32 0.0, %v565
    %v567 = vpop.f32.mrb[0].mxu0
    %v568 = vadd.f32 0.0, %v567
    %v569 = vpop.f32.mrb[0].mxu0
    %v570 = vpop.f32.mrb[0].mxu0
    %571 = vdwg.mxu0
    %572 = vmatprep.subr.bf16.mxu0 0
    %573 = vmatpush1.bf16.msra.mxu0 %v529
    %574 = vmatprep.subr.bf16.mxu0 0
    %575 = vmatpush1.bf16.msra.mxu0 0
    %576 = vmatprep.subr.bf16.mxu0 0
    %577 = vmatpush1.bf16.msra.mxu0 0
    %578 = vmatprep.subr.bf16.mxu0 0
    %579 = vmatpush1.bf16.msra.mxu0 0
    %580 = vmatprep.subr.bf16.mxu0 0
    %581 = vmatpush1.bf16.msra.mxu0 0
    %582 = vmatprep.subr.bf16.mxu0 0
    %583 = vmatpush1.bf16.msra.mxu0 0
    %584 = vmatprep.subr.bf16.mxu0 0
    %585 = vmatpush1.bf16.msra.mxu0 0
    %586 = vmatprep.subr.bf16.mxu0 0
    %587 = vmatpush1.bf16.msra.mxu0 0
    %588 = vmatprep.subr.bf16.mxu0 0
    %589 = vmatpush1.bf16.msra.mxu0 0
    %590 = vmatprep.subr.bf16.mxu0 0
    %591 = vmatpush1.bf16.msra.mxu0 0
    %592 = vmatprep.subr.bf16.mxu0 0
    %593 = vmatpush1.bf16.msra.mxu0 0
    %594 = vmatprep.subr.bf16.mxu0 0
    %595 = vmatpush1.bf16.msra.mxu0 0
    %596 = vmatprep.subr.bf16.mxu0 0
    %597 = vmatpush1.bf16.msra.mxu0 0
    %598 = vmatprep.subr.bf16.mxu0 0
    %599 = vmatpush1.bf16.msra.mxu0 0
    %600 = vmatprep.subr.bf16.mxu0 0
    %601 = vmatpush1.bf16.msra.mxu0 0
    %602 = vmatprep.subr.bf16.mxu0 0
    %603 = vmatpush1.bf16.msra.mxu0 0
    %604 = vmatprep.mubr.bf16.mxu0 0
    %605 = vmatmul.mubr.bf16.gmra.mrb[0].mxu0 %v519
    %v606 = vpop.f32.mrb[0].mxu0
    %v607 = vadd.f32 0.0, %v606
    %v608 = vpop.f32.mrb[0].mxu0
    %v609 = vpop.f32.mrb[0].mxu0
    %v610 = vpop.f32.mrb[0].mxu0
    %611 = vdwg.mxu0
    %v740 = vunpack.c.l.b16 %v379
    %v741 = vunpack.c.h.b16 %v379
    %v742 = vunpack.c.l.b16 %v380
    %v743 = vunpack.c.l.b16 %v381
    %v744 = vunpack.c.h.b16 %v381
    %v745 = vunpack.c.l.b16 %v382
    %v746 = vunpack.c.l.b16 %v383
    %v747 = vunpack.c.h.b16 %v383
    %v748 = vunpack.c.l.b16 %v384
    %v749 = vunpack.c.l.b16 %v385
    %v750 = vunpack.c.h.b16 %v385
    %v751 = vunpack.c.l.b16 %v386
    %v752 = vunpack.c.l.b16 %v387
    %v753 = vunpack.c.h.b16 %v387
    %v754 = vunpack.c.l.b16 %v388
    %v755 = vunpack.c.l.b16 %v389
    %v756 = vunpack.c.h.b16 %v389
    %v757 = vunpack.c.l.b16 %v390
    %v758 = vunpack.c.l.b16 %v391
    %v759 = vunpack.c.h.b16 %v391
    %v760 = vunpack.c.l.b16 %v392
    %v761 = vunpack.c.l.b16 %v393
    %v762 = vunpack.c.h.b16 %v393
    %v763 = vunpack.c.l.b16 %v394
    %v764 = vunpack.c.l.b16 %v395
    %v765 = vunpack.c.h.b16 %v395
    %v766 = vunpack.c.l.b16 %v396
    %v767 = vunpack.c.l.b16 %v397
    %v768 = vunpack.c.h.b16 %v397
    %v769 = vunpack.c.l.b16 %v398
    %v770 = vunpack.c.l.b16 %v399
    %v771 = vunpack.c.h.b16 %v399
    %v772 = vunpack.c.l.b16 %v400
    %v773 = vunpack.c.l.b16 %v401
    %v774 = vunpack.c.h.b16 %v401
    %v775 = vunpack.c.l.b16 %v402
    %v776 = vunpack.c.l.b16 %v403
    %v777 = vunpack.c.h.b16 %v403
    %v778 = vunpack.c.l.b16 %v404
    %v779 = vunpack.c.l.b16 %v405
    %v780 = vunpack.c.h.b16 %v405
    %v781 = vunpack.c.l.b16 %v406
    %v782 = vunpack.c.l.b16 %v407
    %v783 = vunpack.c.h.b16 %v407
    %v784 = vunpack.c.l.b16 %v408
    %v785 = vunpack.c.l.b16 %v409
    %v786 = vunpack.c.h.b16 %v409
    %v787 = vunpack.c.l.b16 %v410
    %v788 = vunpack.c.l.b16 %v411
    %v789 = vunpack.c.h.b16 %v411
    %v790 = vunpack.c.l.b16 %v412
    %v791 = vunpack.c.l.b16 %v413
    %v792 = vunpack.c.h.b16 %v413
    %v793 = vunpack.c.l.b16 %v414
    %v794 = vunpack.c.l.b16 %v415
    %v795 = vunpack.c.h.b16 %v415
    %v796 = vunpack.c.l.b16 %v416
    %v797 = vunpack.c.l.b16 %v417
    %v798 = vunpack.c.h.b16 %v417
    %v799 = vunpack.c.l.b16 %v418
    %v800 = vunpack.c.l.b16 %v419
    %v801 = vunpack.c.h.b16 %v419
    %v802 = vunpack.c.l.b16 %v420
    %v803 = vunpack.c.l.b16 %v421
    %v804 = vunpack.c.h.b16 %v421
    %v805 = vunpack.c.l.b16 %v422
    %v806 = vunpack.c.l.b16 %v423
    %v807 = vunpack.c.h.b16 %v423
    %v808 = vunpack.c.l.b16 %v424
    %v809 = vunpack.c.l.b16 %v425
    %v810 = vunpack.c.h.b16 %v425
    %v811 = vunpack.c.l.b16 %v426
    %v812 = vunpack.c.l.b16 %v427
    %v813 = vunpack.c.h.b16 %v427
    %v814 = vunpack.c.l.b16 %v428
    %v815 = vunpack.c.l.b16 %v429
    %v816 = vunpack.c.h.b16 %v429
    %v817 = vunpack.c.l.b16 %v430
    %v818 = vunpack.c.l.b16 %v431
    %v819 = vunpack.c.h.b16 %v431
    %v820 = vunpack.c.l.b16 %v432
    %v821 = vunpack.c.l.b16 %v433
    %v822 = vunpack.c.h.b16 %v433
    %v823 = vunpack.c.l.b16 %v434
    %v824 = vunpack.c.l.b16 %v435
    %v825 = vunpack.c.h.b16 %v435
    %v826 = vunpack.c.l.b16 %v436
    %v827 = vunpack.c.l.b16 %v437
    %v828 = vunpack.c.h.b16 %v437
    %v829 = vunpack.c.l.b16 %v438
    %v830 = vunpack.c.l.b16 %v439
    %v831 = vunpack.c.h.b16 %v439
    %v832 = vunpack.c.l.b16 %v440
    %v833 = vunpack.c.l.b16 %v441
    %v834 = vunpack.c.h.b16 %v441
    %v835 = vunpack.c.l.b16 %v442
    %v836 = vunpack.c.l.b16 %v443
    %v837 = vunpack.c.h.b16 %v443
    %v838 = vunpack.c.l.b16 %v444
    %v839 = vunpack.c.l.b16 %v445
    %v840 = vunpack.c.h.b16 %v445
    %v841 = vunpack.c.l.b16 %v446
    %v842 = vunpack.c.l.b16 %v447
    %v843 = vunpack.c.h.b16 %v447
    %v844 = vunpack.c.l.b16 %v448
    %v845 = vunpack.c.l.b16 %v449
    %v846 = vunpack.c.h.b16 %v449
    %v847 = vunpack.c.l.b16 %v450
    %v848 = vunpack.c.l.b16 %v451
    %v849 = vunpack.c.h.b16 %v451
    %v850 = vunpack.c.l.b16 %v452
    %v851 = vunpack.c.l.b16 %v453
    %v852 = vunpack.c.h.b16 %v453
    %v853 = vunpack.c.l.b16 %v454
    %v854 = vunpack.c.l.b16 %v455
    %v855 = vunpack.c.h.b16 %v455
    %v856 = vunpack.c.l.b16 %v456
    %v857 = vunpack.c.l.b16 %v457
    %v858 = vunpack.c.h.b16 %v457
    %v859 = vunpack.c.l.b16 %v458
    %v860 = vunpack.c.l.b16 %v459
    %v861 = vunpack.c.h.b16 %v459
    %v862 = vunpack.c.l.b16 %v460
    %v863 = vunpack.c.l.b16 %v461
    %v864 = vunpack.c.h.b16 %v461
    %v865 = vunpack.c.l.b16 %v462
    %v866 = vunpack.c.l.b16 %v463
    %v867 = vunpack.c.h.b16 %v463
    %v868 = vunpack.c.l.b16 %v464
    %v869 = vunpack.c.l.b16 %v465
    %v870 = vunpack.c.h.b16 %v465
    %v871 = vunpack.c.l.b16 %v466
    %v872 = vunpack.c.l.b16 %v467
    %v873 = vunpack.c.h.b16 %v467
    %v874 = vunpack.c.l.b16 %v468
    %v875 = vunpack.c.l.b16 %v469
    %v876 = vunpack.c.h.b16 %v469
    %v877 = vunpack.c.l.b16 %v470
    %v878 = vunpack.c.l.b16 %v471
    %v879 = vunpack.c.h.b16 %v471
    %v880 = vunpack.c.l.b16 %v472
    %v881 = vunpack.c.l.b16 %v473
    %v882 = vunpack.c.h.b16 %v473
    %v883 = vunpack.c.l.b16 %v474
    %v884 = vunpack.c.l.b16 %v475
    %v885 = vunpack.c.h.b16 %v475
    %v886 = vunpack.c.l.b16 %v476
    %v887 = vunpack.c.l.b16 %v477
    %v888 = vunpack.c.h.b16 %v477
    %v889 = vunpack.c.l.b16 %v478
    %v890 = vunpack.c.l.b16 %v479
    %v891 = vunpack.c.h.b16 %v479
    %v892 = vunpack.c.l.b16 %v480
    %v893 = vunpack.c.l.b16 %v481
    %v894 = vunpack.c.h.b16 %v481
    %v895 = vunpack.c.l.b16 %v482
    %v896 = vunpack.c.l.b16 %v483
    %v897 = vunpack.c.h.b16 %v483
    %v898 = vunpack.c.l.b16 %v484
    %v899 = vunpack.c.l.b16 %v485
    %v900 = vunpack.c.h.b16 %v485
    %v901 = vunpack.c.l.b16 %v486
    %v902 = vunpack.c.l.b16 %v487
    %v903 = vunpack.c.h.b16 %v487
    %v904 = vunpack.c.l.b16 %v488
    %v905 = vunpack.c.l.b16 %v489
    %v906 = vunpack.c.h.b16 %v489
    %v907 = vunpack.c.l.b16 %v490
    %v908 = vunpack.c.l.b16 %v491
    %v909 = vunpack.c.h.b16 %v491
    %v910 = vunpack.c.l.b16 %v492
    %v911 = vunpack.c.l.b16 %v493
    %v912 = vunpack.c.h.b16 %v493
    %v913 = vunpack.c.l.b16 %v494
    %v914 = vunpack.c.l.b16 %v495
    %v915 = vunpack.c.h.b16 %v495
    %v916 = vunpack.c.l.b16 %v496
    %v917 = vunpack.c.l.b16 %v497
    %v918 = vunpack.c.h.b16 %v497
    %v919 = vunpack.c.l.b16 %v498
    %v920 = vunpack.c.l.b16 %v499
    %v921 = vunpack.c.h.b16 %v499
    %v922 = vunpack.c.l.b16 %v500
    %v923 = vunpack.c.l.b16 %v501
    %v924 = vunpack.c.h.b16 %v501
    %v925 = vunpack.c.l.b16 %v502
    %v926 = vunpack.c.l.b16 %v503
    %v927 = vunpack.c.h.b16 %v503
    %v928 = vunpack.c.l.b16 %v504
    %v929 = vunpack.c.l.b16 %v505
    %v930 = vunpack.c.h.b16 %v505
    %v931 = vunpack.c.l.b16 %v506
    %v932 = vpack.c.b16 %v743, %v740
    %v933 = vpack.c.b16 %v744, %v741
    %v934 = vpack.c.b16 %v745, %v742
    %v935 = vpack.c.b16 %v749, %v746
    %v936 = vpack.c.b16 %v750, %v747
    %v937 = vpack.c.b16 %v751, %v748
    %v938 = vpack.c.b16 %v755, %v752
    %v939 = vpack.c.b16 %v756, %v753
    %v940 = vpack.c.b16 %v757, %v754
    %v941 = vpack.c.b16 %v761, %v758
    %v942 = vpack.c.b16 %v762, %v759
    %v943 = vpack.c.b16 %v763, %v760
    %v944 = vpack.c.b16 %v767, %v764
    %v945 = vpack.c.b16 %v768, %v765
    %v946 = vpack.c.b16 %v769, %v766
    %v947 = vpack.c.b16 %v773, %v770
    %v948 = vpack.c.b16 %v774, %v771
    %v949 = vpack.c.b16 %v775, %v772
    %v950 = vpack.c.b16 %v779, %v776
    %v951 = vpack.c.b16 %v780, %v777
    %v952 = vpack.c.b16 %v781, %v778
    %v953 = vpack.c.b16 %v785, %v782
    %v954 = vpack.c.b16 %v786, %v783
    %v955 = vpack.c.b16 %v787, %v784
    %v956 = vpack.c.b16 %v791, %v788
    %v957 = vpack.c.b16 %v792, %v789
    %v958 = vpack.c.b16 %v793, %v790
    %v959 = vpack.c.b16 %v797, %v794
    %v960 = vpack.c.b16 %v798, %v795
    %v961 = vpack.c.b16 %v799, %v796
    %v962 = vpack.c.b16 %v803, %v800
    %v963 = vpack.c.b16 %v804, %v801
    %v964 = vpack.c.b16 %v805, %v802
    %v965 = vpack.c.b16 %v809, %v806
    %v966 = vpack.c.b16 %v810, %v807
    %v967 = vpack.c.b16 %v811, %v808
    %v968 = vpack.c.b16 %v815, %v812
    %v969 = vpack.c.b16 %v816, %v813
    %v970 = vpack.c.b16 %v817, %v814
    %v971 = vpack.c.b16 %v821, %v818
    %v972 = vpack.c.b16 %v822, %v819
    %v973 = vpack.c.b16 %v823, %v820
    %v974 = vpack.c.b16 %v827, %v824
    %v975 = vpack.c.b16 %v828, %v825
    %v976 = vpack.c.b16 %v829, %v826
    %v977 = vpack.c.b16 %v833, %v830
    %v978 = vpack.c.b16 %v834, %v831
    %v979 = vpack.c.b16 %v835, %v832
    %v980 = vpack.c.b16 %v839, %v836
    %v981 = vpack.c.b16 %v840, %v837
    %v982 = vpack.c.b16 %v841, %v838
    %v983 = vpack.c.b16 %v845, %v842
    %v984 = vpack.c.b16 %v846, %v843
    %v985 = vpack.c.b16 %v847, %v844
    %v986 = vpack.c.b16 %v851, %v848
    %v987 = vpack.c.b16 %v852, %v849
    %v988 = vpack.c.b16 %v853, %v850
    %v989 = vpack.c.b16 %v857, %v854
    %v990 = vpack.c.b16 %v858, %v855
    %v991 = vpack.c.b16 %v859, %v856
    %v992 = vpack.c.b16 %v863, %v860
    %v993 = vpack.c.b16 %v864, %v861
    %v994 = vpack.c.b16 %v865, %v862
    %v995 = vpack.c.b16 %v869, %v866
    %v996 = vpack.c.b16 %v870, %v867
    %v997 = vpack.c.b16 %v871, %v868
    %v998 = vpack.c.b16 %v875, %v872
    %v999 = vpack.c.b16 %v876, %v873
    %v1000 = vpack.c.b16 %v877, %v874
    %v1001 = vpack.c.b16 %v881, %v878
    %v1002 = vpack.c.b16 %v882, %v879
    %v1003 = vpack.c.b16 %v883, %v880
    %v1004 = vpack.c.b16 %v887, %v884
    %v1005 = vpack.c.b16 %v888, %v885
    %v1006 = vpack.c.b16 %v889, %v886
    %v1007 = vpack.c.b16 %v893, %v890
    %v1008 = vpack.c.b16 %v894, %v891
    %v1009 = vpack.c.b16 %v895, %v892
    %v1010 = vpack.c.b16 %v899, %v896
    %v1011 = vpack.c.b16 %v900, %v897
    %v1012 = vpack.c.b16 %v901, %v898
    %v1013 = vpack.c.b16 %v905, %v902
    %v1014 = vpack.c.b16 %v906, %v903
    %v1015 = vpack.c.b16 %v907, %v904
    %v1016 = vpack.c.b16 %v911, %v908
    %v1017 = vpack.c.b16 %v912, %v909
    %v1018 = vpack.c.b16 %v913, %v910
    %v1019 = vpack.c.b16 %v917, %v914
    %v1020 = vpack.c.b16 %v918, %v915
    %v1021 = vpack.c.b16 %v919, %v916
    %v1022 = vpack.c.b16 %v923, %v920
    %v1023 = vpack.c.b16 %v924, %v921
    %v1024 = vpack.c.b16 %v925, %v922
    %v1025 = vpack.c.b16 %v929, %v926
    %v1026 = vpack.c.b16 %v930, %v927
    %v1027 = vpack.c.b16 %v931, %v928
    %1124 = vmatprep.subr.bf16.mxu0 %v933
    %1125 = vmatpush1.bf16.msra.mxu0 %v932
    %1126 = vmatprep.subr.bf16.mxu0 %v936
    %1127 = vmatpush1.bf16.msra.mxu0 %v935
    %1128 = vmatprep.subr.bf16.mxu0 %v939
    %1129 = vmatpush1.bf16.msra.mxu0 %v938
    %1130 = vmatprep.subr.bf16.mxu0 %v942
    %1131 = vmatpush1.bf16.msra.mxu0 %v941
    %1132 = vmatprep.subr.bf16.mxu0 %v945
    %1133 = vmatpush1.bf16.msra.mxu0 %v944
    %1134 = vmatprep.subr.bf16.mxu0 %v948
    %1135 = vmatpush1.bf16.msra.mxu0 %v947
    %1136 = vmatprep.subr.bf16.mxu0 %v951
    %1137 = vmatpush1.bf16.msra.mxu0 %v950
    %1138 = vmatprep.subr.bf16.mxu0 %v954
    %1139 = vmatpush1.bf16.msra.mxu0 %v953
    %1140 = vmatprep.subr.bf16.mxu0 %v957
    %1141 = vmatpush1.bf16.msra.mxu0 %v956
    %1142 = vmatprep.subr.bf16.mxu0 %v960
    %1143 = vmatpush1.bf16.msra.mxu0 %v959
    %1144 = vmatprep.subr.bf16.mxu0 %v963
    %1145 = vmatpush1.bf16.msra.mxu0 %v962
    %1146 = vmatprep.subr.bf16.mxu0 %v966
    %1147 = vmatpush1.bf16.msra.mxu0 %v965
    %1148 = vmatprep.subr.bf16.mxu0 %v969
    %1149 = vmatpush1.bf16.msra.mxu0 %v968
    %1150 = vmatprep.subr.bf16.mxu0 %v972
    %1151 = vmatpush1.bf16.msra.mxu0 %v971
    %1152 = vmatprep.subr.bf16.mxu0 %v975
    %1153 = vmatpush1.bf16.msra.mxu0 %v974
    %1154 = vmatprep.subr.bf16.mxu0 %v978
    %1155 = vmatpush1.bf16.msra.mxu0 %v977
    %1156 = vmatprep.mubr.bf16.mxu0 %v376
    %1157 = vmatmul.mubr.bf16.gmra.mrb[0].mxu0 %v375
    %v1158 = vpop.f32.mrb[0].mxu0
    %v1159 = vadd.f32 %v566, %v1158
    %v1160 = vpop.f32.mrb[0].mxu0
    %v1161 = vadd.f32 %v568, %v1160
    %v1162 = vpop.f32.mrb[0].mxu0
    %v1163 = vpop.f32.mrb[0].mxu0
    %1164 = vdwg.mxu0
    %1165 = vmatprep.subr.bf16.mxu0 %v981
    %1166 = vmatpush1.bf16.msra.mxu0 %v980
    %1167 = vmatprep.subr.bf16.mxu0 %v984
    %1168 = vmatpush1.bf16.msra.mxu0 %v983
    %1169 = vmatprep.subr.bf16.mxu0 %v987
    %1170 = vmatpush1.bf16.msra.mxu0 %v986
    %1171 = vmatprep.subr.bf16.mxu0 %v990
    %1172 = vmatpush1.bf16.msra.mxu0 %v989
    %1173 = vmatprep.subr.bf16.mxu0 %v993
    %1174 = vmatpush1.bf16.msra.mxu0 %v992
    %1175 = vmatprep.subr.bf16.mxu0 %v996
    %1176 = vmatpush1.bf16.msra.mxu0 %v995
    %1177 = vmatprep.subr.bf16.mxu0 %v999
    %1178 = vmatpush1.bf16.msra.mxu0 %v998
    %1179 = vmatprep.subr.bf16.mxu0 %v1002
    %1180 = vmatpush1.bf16.msra.mxu0 %v1001
    %1181 = vmatprep.subr.bf16.mxu0 %v1005
    %1182 = vmatpush1.bf16.msra.mxu0 %v1004
    %1183 = vmatprep.subr.bf16.mxu0 %v1008
    %1184 = vmatpush1.bf16.msra.mxu0 %v1007
    %1185 = vmatprep.subr.bf16.mxu0 %v1011
    %1186 = vmatpush1.bf16.msra.mxu0 %v1010
    %1187 = vmatprep.subr.bf16.mxu0 %v1014
    %1188 = vmatpush1.bf16.msra.mxu0 %v1013
    %1189 = vmatprep.subr.bf16.mxu0 %v1017
    %1190 = vmatpush1.bf16.msra.mxu0 %v1016
    %1191 = vmatprep.subr.bf16.mxu0 %v1020
    %1192 = vmatpush1.bf16.msra.mxu0 %v1019
    %1193 = vmatprep.subr.bf16.mxu0 %v1023
    %1194 = vmatpush1.bf16.msra.mxu0 %v1022
    %1195 = vmatprep.subr.bf16.mxu0 %v1026
    %1196 = vmatpush1.bf16.msra.mxu0 %v1025
    %1197 = vmatprep.mubr.bf16.mxu0 %v378
    %1198 = vmatmul.mubr.bf16.gmra.mrb[0].mxu0 %v377
    %v1199 = vpop.f32.mrb[0].mxu0
    %v1200 = vadd.f32 %v1159, %v1199
    %v1201 = vpop.f32.mrb[0].mxu0
    %v1202 = vadd.f32 %v1161, %v1201
    %v1203 = vpop.f32.mrb[0].mxu0
    %v1204 = vpop.f32.mrb[0].mxu0
    %1205 = vdwg.mxu0
    %1206 = vmatprep.subr.bf16.mxu0 0
    %1207 = vmatpush1.bf16.msra.mxu0 %v934
    %1208 = vmatprep.subr.bf16.mxu0 0
    %1209 = vmatpush1.bf16.msra.mxu0 %v937
    %1210 = vmatprep.subr.bf16.mxu0 0
    %1211 = vmatpush1.bf16.msra.mxu0 %v940
    %1212 = vmatprep.subr.bf16.mxu0 0
    %1213 = vmatpush1.bf16.msra.mxu0 %v943
    %1214 = vmatprep.subr.bf16.mxu0 0
    %1215 = vmatpush1.bf16.msra.mxu0 %v946
    %1216 = vmatprep.subr.bf16.mxu0 0
    %1217 = vmatpush1.bf16.msra.mxu0 %v949
    %1218 = vmatprep.subr.bf16.mxu0 0
    %1219 = vmatpush1.bf16.msra.mxu0 %v952
    %1220 = vmatprep.subr.bf16.mxu0 0
    %1221 = vmatpush1.bf16.msra.mxu0 %v955
    %1222 = vmatprep.subr.bf16.mxu0 0
    %1223 = vmatpush1.bf16.msra.mxu0 %v958
    %1224 = vmatprep.subr.bf16.mxu0 0
    %1225 = vmatpush1.bf16.msra.mxu0 %v961
    %1226 = vmatprep.subr.bf16.mxu0 0
    %1227 = vmatpush1.bf16.msra.mxu0 %v964
    %1228 = vmatprep.subr.bf16.mxu0 0
    %1229 = vmatpush1.bf16.msra.mxu0 %v967
    %1230 = vmatprep.subr.bf16.mxu0 0
    %1231 = vmatpush1.bf16.msra.mxu0 %v970
    %1232 = vmatprep.subr.bf16.mxu0 0
    %1233 = vmatpush1.bf16.msra.mxu0 %v973
    %1234 = vmatprep.subr.bf16.mxu0 0
    %1235 = vmatpush1.bf16.msra.mxu0 %v976
    %1236 = vmatprep.subr.bf16.mxu0 0
    %1237 = vmatpush1.bf16.msra.mxu0 %v979
    %1238 = vmatprep.mubr.bf16.mxu0 %v376
    %1239 = vmatmul.mubr.bf16.gmra.mrb[0].mxu0 %v375
    %v1240 = vpop.f32.mrb[0].mxu0
    %v1241 = vadd.f32 %v607, %v1240
    %v1242 = vpop.f32.mrb[0].mxu0
    %v1243 = vpop.f32.mrb[0].mxu0
    %v1244 = vpop.f32.mrb[0].mxu0
    %1245 = vdwg.mxu0
    %1246 = vmatprep.subr.bf16.mxu0 0
    %1247 = vmatpush1.bf16.msra.mxu0 %v982
    %1248 = vmatprep.subr.bf16.mxu0 0
    %1249 = vmatpush1.bf16.msra.mxu0 %v985
    %1250 = vmatprep.subr.bf16.mxu0 0
    %1251 = vmatpush1.bf16.msra.mxu0 %v988
    %1252 = vmatprep.subr.bf16.mxu0 0
    %1253 = vmatpush1.bf16.msra.mxu0 %v991
    %1254 = vmatprep.subr.bf16.mxu0 0
    %1255 = vmatpush1.bf16.msra.mxu0 %v994
    %1256 = vmatprep.subr.bf16.mxu0 0
    %1257 = vmatpush1.bf16.msra.mxu0 %v997
    %1258 = vmatprep.subr.bf16.mxu0 0
    %1259 = vmatpush1.bf16.msra.mxu0 %v1000
    %1260 = vmatprep.subr.bf16.mxu0 0
    %1261 = vmatpush1.bf16.msra.mxu0 %v1003
    %1262 = vmatprep.subr.bf16.mxu0 0
    %1263 = vmatpush1.bf16.msra.mxu0 %v1006
    %1264 = vmatprep.subr.bf16.mxu0 0
    %1265 = vmatpush1.bf16.msra.mxu0 %v1009
    %1266 = vmatprep.subr.bf16.mxu0 0
    %1267 = vmatpush1.bf16.msra.mxu0 %v1012
    %1268 = vmatprep.subr.bf16.mxu0 0
    %1269 = vmatpush1.bf16.msra.mxu0 %v1015
    %1270 = vmatprep.subr.bf16.mxu0 0
    %1271 = vmatpush1.bf16.msra.mxu0 %v1018
    %1272 = vmatprep.subr.bf16.mxu0 0
    %1273 = vmatpush1.bf16.msra.mxu0 %v1021
    %1274 = vmatprep.subr.bf16.mxu0 0
    %1275 = vmatpush1.bf16.msra.mxu0 %v1024
    %1276 = vmatprep.subr.bf16.mxu0 0
    %1277 = vmatpush1.bf16.msra.mxu0 %v1027
    %1278 = vmatprep.mubr.bf16.mxu0 %v378
    %1279 = vmatmul.mubr.bf16.gmra.mrb[0].mxu0 %v377
    %v1280 = vpop.f32.mrb[0].mxu0
    %v1281 = vadd.f32 %v1241, %v1280
    %v1282 = vpop.f32.mrb[0].mxu0
    %v1283 = vpop.f32.mrb[0].mxu0
    %v1284 = vpop.f32.mrb[0].mxu0
    %1285 = vdwg.mxu0
    %v1286 = vld [vmem:[%s7] sm:$0x7]
    %v1288 = vlaneseq
    %v1289 = vshrl.u32 %v1288, 7
    %v1290 = vsub.s32 0, %v1289
    %v1291 = vrot.slane %v1286, %v1290
    %v1292 = vlaneseq
    %v1293 = vshrl.u32 %v1292, 7
    %v1294 = vsub.s32 1, %v1293
    %v1295 = vrot.slane %v1286, %v1294
    %v1296 = vlaneseq
    %v1297 = vshrl.u32 %v1296, 7
    %v1298 = vsub.s32 2, %v1297
    %v1299 = vrot.slane %v1286, %v1298
    %v1303 = vadd.f32 %v1200, %v1291
    %v1304 = vadd.f32 %v1202, %v1295
    %v1305 = vadd.f32 %v1281, %v1299
    %v1306 = vmax.f32 %v1303, 0.0
    %v1307 = vmax.f32 %v1304, 0.0
    %v1308 = vmax.f32 %v1305, 0.0
    %v1309 = vld [vmem:[%s8] sm:$0x7]
    %v1311 = vlaneseq
    %v1312 = vshrl.u32 %v1311, 7
    %v1313 = vsub.s32 0, %v1312
    %v1314 = vrot.slane %v1309, %v1313
    %v1315 = vlaneseq
    %v1316 = vshrl.u32 %v1315, 7
    %v1317 = vsub.s32 1, %v1316
    %v1318 = vrot.slane %v1309, %v1317
    %v1319 = vlaneseq
    %v1320 = vshrl.u32 %v1319, 7
    %v1321 = vsub.s32 2, %v1320
    %v1322 = vrot.slane %v1309, %v1321
    %v1326 = vmul.f32 %v1306, %v1314
    %v1327 = vmul.f32 %v1307, %v1318
    %v1328 = vmul.f32 %v1308, %v1322
    %v1329 = vadd.f32 %v1326, %v1327
    %v1330 = vadd.f32 %v1329, %v1328
    %1331 = vadd.xlane.f32.xlu0 %v1330
    %v1332 = vpop.xlane.xlu0 %1331
    %v1333 = vld [vmem:[#allocation2] sm:$0x1]
    %v1335 = vlaneseq
    %v1336 = vshrl.u32 %v1335, 7
    %v1337 = vsub.s32 0, %v1336
    %v1338 = vrot.slane %v1333, %v1337
    %v1340 = vadd.f32 %v1332, %v1338
    %vm1341 = vcmask 7168
    %1342 = vst.msk [vmem:[%s10] sm:$0xff] %vm1341, %v1340
    // Predicated region
    $region58: #{tpu_custom_call.1} parent=1 // pred_check
      _
    $region59: #{tpu_custom_call.1} parent=1 // pred_check_branch
      %1344 = sbr.rel (0) target = $region61
    $region60: #{tpu_custom_call.1} parent=1 // pred_region
      _
    $region61: #{tpu_custom_call.1} parent=1 // pred_fallthru
      _
    // Predicated region
    $region62: #{tpu_custom_call.1} parent=1 // pred_check
      _
    $region63: #{tpu_custom_call.1} parent=1 // pred_check_branch
      %1346 = sbr.rel (0) target = $region65
    $region64: #{tpu_custom_call.1} parent=1 // pred_region
      _
    $region65: #{tpu_custom_call.1} parent=1 // pred_fallthru
      _
    %1347 = vsyncpa [#allocation4], 1
    %1348 = vsyncpa [#allocation6], 1
    %1349 = vsyncpa [#allocation9], 1

</llo_original>
